<compile_context>
chip_gen: v7x
topology: tpu7x:2x2x1
jax: 0.10.0
libtpu: 0.0.40
codegen_flags: <defaults>
</compile_context>

<pallas_src>
import functools

import jax
import jax.numpy as jnp
from jax.experimental import pallas as pl
from jax.experimental.pallas import tpu as pltpu

EPS = 1e-5
LANE = 128


# ------------------------------ small helpers --------------------------------
def _round_up(x, m):
    return (x + m - 1) // m * m


def _pad2d(a, rows, cols):
    r, c = a.shape
    return jnp.pad(a, ((0, rows - r), (0, cols - c)))


def _pad_vec(v, n):
    return jnp.pad(v, (0, n - v.shape[0]))


@functools.lru_cache(maxsize=None)
def _vmem_limit_bytes():
    """Generation-aware scoped-VMEM limit with headroom below physical capacity."""
    cap = 64 * 2 ** 20                                 # conservative fallback (v7x-sized)
    try:
        cap = int(getattr(pltpu.get_tpu_info(), "vmem_capacity_bytes", cap))
    except Exception:
        pass
    # ~48 MiB on a 64 MiB part (v7x), ~96 MiB on a 128 MiB part (v5e/v6e).
    return min(cap * 3 // 4, 100 * 2 ** 20)


def _compiler_params():
    return pltpu.CompilerParams(
        dimension_semantics=("parallel",),
        vmem_limit_bytes=_vmem_limit_bytes())


def _choose_tm(M, k_max, Cp, vmem_limit):
    """Pick the M tile: as large as the VMEM budget allows, >=2 grid steps, 16-row aligned."""
    tm = 1024 if vmem_limit >= 64 * 2 ** 20 else 512   # 1024 on v5e/v6e, 512 on v7x
    def vmem_need(t):
        # double-buffered bf16 patch & y tiles + double-buffered bf16 weight + stats/vecs
        return 2 * (t * k_max * 2) + 2 * (k_max * Cp * 2) + 2 * (t * Cp * 2) + 16 * Cp * 4
    while tm > 128 and vmem_need(tm) > vmem_limit // 2:
        tm //= 2
    if M <= tm:
        # Keep >= 2 grid steps: lets the "parallel" axis shard across v7x's two TensorCores
        # and keeps the DMA/compute pipeline busy; harmless on single-TC v5e/v6e.
        tm = max(16, _round_up(pl.cdiv(M, 2), 16))
    return _round_up(tm, 16)


# ------------------------------ Pallas kernels --------------------------------
def _matmul_stats_kernel(x_ref, w_ref, y_ref, stats_ref):
    """y tile = bf16 patches @ bf16 weights (f32 MXU accumulation) + BN partial stats.

    y is stored in bf16 (halves the HBM round trip of the intermediate); the BN partial
    sums are taken from the f32 accumulator before the down-cast.
    """
    y = jnp.dot(x_ref[...], w_ref[...], preferred_element_type=jnp.float32)
    y_ref[...] = y.astype(y_ref.dtype)
    s = jnp.sum(y, axis=0, keepdims=True)
    ss = jnp.sum(y * y, axis=0, keepdims=True)
    stats_ref[...] = jnp.concatenate([s, ss], axis=0)[None]        # (1, 2, Cp)


def _bn_apply_kernel(*refs, apply_relu, residual_mode):
    """out = y*scale + shift (+ residual, itself optionally BN-folded) (+ ReLU). f32 epilogue."""
    if residual_mode == "bn":
        y_ref, sc_ref, sh_ref, ry_ref, rsc_ref, rsh_ref, out_ref = refs
    elif residual_mode == "raw":
        y_ref, sc_ref, sh_ref, res_ref, out_ref = refs
    else:
        y_ref, sc_ref, sh_ref, out_ref = refs
    out = y_ref[...].astype(jnp.float32) * sc_ref[...] + sh_ref[...]
    if residual_mode == "bn":
        out = out + (ry_ref[...].astype(jnp.float32) * rsc_ref[...] + rsh_ref[...])
    elif residual_mode == "raw":
        out = out + res_ref[...].astype(jnp.float32)
    if apply_relu:
        out = jnp.maximum(out, 0.0)
    out_ref[...] = out.astype(out_ref.dtype)


# ------------------------------ kernel wrappers --------------------------------
def conv_matmul_stats(patches_bf16, w_bf16, tm):
    Mp, Kp = patches_bf16.shape
    Cp = w_bf16.shape[1]
    grid_m = Mp // tm
    y, stats = pl.pallas_call(
        _matmul_stats_kernel,
        grid=(grid_m,),
        in_specs=[pl.BlockSpec((tm, Kp), lambda i: (i, 0)),
                  pl.BlockSpec((Kp, Cp), lambda i: (0, 0))],
        out_specs=[pl.BlockSpec((tm, Cp), lambda i: (i, 0)),
                   pl.BlockSpec((1, 2, Cp), lambda i: (i, 0, 0))],
        out_shape=[jax.ShapeDtypeStruct((Mp, Cp), jnp.bfloat16),
                   jax.ShapeDtypeStruct((grid_m, 2, Cp), jnp.float32)],
        compiler_params=_compiler_params(),
    )(patches_bf16, w_bf16)
    return y, stats


def fold_bn(stats, m_true, gamma_p, beta_p):
    """Reduce per-tile partials -> global mean/var -> per-channel scale/shift (tiny, in JAX)."""
    total = jnp.sum(stats[:, 0, :], axis=0)
    total_sq = jnp.sum(stats[:, 1, :], axis=0)
    mean = total / m_true
    var = jnp.maximum(total_sq / m_true - mean * mean, 0.0)   # biased var, like torch train BN
    inv = jax.lax.rsqrt(var + EPS)
    scale = gamma_p * inv
    shift = beta_p - mean * scale
    return scale.reshape(1, -1), shift.reshape(1, -1)


def bn_apply(y, scale, shift, *, tm, apply_relu, out_dtype,
             residual_mode="none", residual_args=()):
    Mp, Cp = y.shape
    grid_m = Mp // tm
    row_spec = pl.BlockSpec((tm, Cp), lambda i: (i, 0))
    vec_spec = pl.BlockSpec((1, Cp), lambda i: (0, 0))
    args = [y, scale, shift]
    in_specs = [row_spec, vec_spec, vec_spec]
    if residual_mode == "bn":
        args += list(residual_args)
        in_specs += [row_spec, vec_spec, vec_spec]
    elif residual_mode == "raw":
        args += list(residual_args)
        in_specs += [row_spec]
    kernel = functools.partial(_bn_apply_kernel, apply_relu=apply_relu,
                               residual_mode=residual_mode)
    return pl.pallas_call(
        kernel,
        grid=(grid_m,),
        in_specs=in_specs,
        out_specs=row_spec,
        out_shape=jax.ShapeDtypeStruct((Mp, Cp), out_dtype),
        compiler_params=_compiler_params(),
    )(*args)


# ------------------------------ JAX glue -------------------------------------
def im2col(x_nhwc, ksize, stride, pad):
    """im2col in NHWC; feature order is (kh, kw, cin)."""
    N, H, W, C = x_nhwc.shape
    xp = jnp.pad(x_nhwc, ((0, 0), (pad, pad), (pad, pad), (0, 0)))
    Ho = (H + 2 * pad - ksize) // stride + 1
    Wo = (W + 2 * pad - ksize) // stride + 1
    cols = []
    for i in range(ksize):
        for j in range(ksize):
            cols.append(xp[:, i:i + stride * (Ho - 1) + 1:stride,
                           j:j + stride * (Wo - 1) + 1:stride, :])
    patches = jnp.concatenate(cols, axis=-1)                     # [N, Ho, Wo, k*k*C]
    return patches.reshape(N * Ho * Wo, ksize * ksize * C), Ho, Wo


def torch_weight_to_mat(w_oihw):
    """[Cout, Cin, kh, kw] -> [kh*kw*Cin, Cout] matching im2col (kh, kw, cin) order."""
    cout = w_oihw.shape[0]
    return jnp.transpose(w_oihw, (2, 3, 1, 0)).reshape(-1, cout)


def basic_block_forward(x_nchw, params, stride):
    x = jnp.transpose(x_nchw, (0, 2, 3, 1))                        # NHWC
    N, H, W, Cin = x.shape
    planes = params["w1"].shape[0]
    Cp = _round_up(planes, LANE)                                   # lane-dense channel pad
    x_bf = x.astype(jnp.bfloat16)                                  # matmul inputs in bf16

    Ho = (H + 2 - 3) // stride + 1
    Wo = (W + 2 - 3) // stride + 1
    M = N * Ho * Wo

    K1 = _round_up(9 * Cin, LANE)
    K2 = _round_up(9 * planes, LANE)
    Ks = _round_up(Cin, LANE)
    tm = _choose_tm(M, max(K1, K2, Ks), Cp, _vmem_limit_bytes())
    Mp = _round_up(M, tm)

    def prep(patches, w_oihw):
        Kp = _round_up(patches.shape[1], LANE)                     # lane-dense K (multiple of 128)
        patches = _pad2d(patches, Mp, Kp)
        w = _pad2d(torch_weight_to_mat(w_oihw).astype(jnp.bfloat16), Kp, Cp)
        return patches, w

    # ---- conv1 (3x3, stride, pad=1) + bn1 + relu (emitted in bf16) ----
    p1, _, _ = im2col(x_bf, 3, stride, 1)
    p1, w1 = prep(p1, params["w1"])
    y1, st1 = conv_matmul_stats(p1, w1, tm)
    sc1, sh1 = fold_bn(st1, M, _pad_vec(params["g1"], Cp), _pad_vec(params["b1"], Cp))
    out1 = bn_apply(y1, sc1, sh1, tm=tm, apply_relu=True, out_dtype=jnp.bfloat16)

    # ---- shortcut ----
    if stride != 1 or Cin != planes:
        ps, _, _ = im2col(x_bf, 1, stride, 0)
        ps, ws = prep(ps, params["ws"])
        ys, sts = conv_matmul_stats(ps, ws, tm)
        scs, shs = fold_bn(sts, M, _pad_vec(params["gs"], Cp), _pad_vec(params["bs"], Cp))
        residual_mode, residual_args = "bn", (ys, scs, shs)        # shortcut BN folded into epilogue
    else:
        # identity shortcut: bf16 residual, no separate f32 zero-padded round trip
        res = _pad2d(x_bf.reshape(N * H * W, Cin), Mp, Cp)
        residual_mode, residual_args = "raw", (res,)

    # ---- conv2 (3x3, stride=1, pad=1) + bn2 + residual add + relu ----
    # TODO(synk): when planes % 128 == 0 this channel slice is a no-op; keeping out1
    #             channel-padded for planes < 128 would blow conv2's K up by Cp/planes,
    #             so we slice instead (out1 is already bf16, so the pass is half-width).
    out1_img = out1[:M, :planes].reshape(N, Ho, Wo, planes)
    p2, _, _ = im2col(out1_img, 3, 1, 1)
    p2, w2 = prep(p2, params["w2"])
    y2, st2 = conv_matmul_stats(p2, w2, tm)
    sc2, sh2 = fold_bn(st2, M, _pad_vec(params["g2"], Cp), _pad_vec(params["b2"], Cp))
    out = bn_apply(y2, sc2, sh2, tm=tm, apply_relu=True, out_dtype=jnp.float32,
                   residual_mode=residual_mode, residual_args=residual_args)

    out = out[:M, :planes].reshape(N, Ho, Wo, planes)
    return jnp.transpose(out, (0, 3, 1, 2))                        # back to NCHW


# --------------------------- pure-JAX reference -------------------------------
def reference_forward(x, params, stride):
    def conv(x, w, s, pad):
        return jax.lax.conv_general_dilated(
            x, w, (s, s), [(pad, pad), (pad, pad)],
            dimension_numbers=("NCHW", "OIHW", "NCHW"))

    def bn(x, g, b):
        mean = jnp.mean(x, axis=(0, 2, 3), keepdims=True)
        var = jnp.mean((x - mean) ** 2, axis=(0, 2, 3), keepdims=True)
        xn = (x - mean) * jax.lax.rsqrt(var + EPS)
        return xn * g.reshape(1, -1, 1, 1) + b.reshape(1, -1, 1, 1)

    planes = params["w1"].shape[0]
    out = jax.nn.relu(bn(conv(x, params["w1"], stride, 1), params["g1"], params["b1"]))
    out = bn(conv(out, params["w2"], 1, 1), params["g2"], params["b2"])
    if stride != 1 or x.shape[1] != planes:
        sc = bn(conv(x, params["ws"], stride, 0), params["gs"], params["bs"])
    else:
        sc = x
    return jax.nn.relu(out + sc)


# ---------------------------------- main --------------------------------------
if __name__ == "__main__":
    N, Cin, H, W = 2, 4, 16, 16
    planes, stride = 8, 2

    key = jax.random.PRNGKey(0)
    ks = jax.random.split(key, 8)
    params = {
        "w1": 0.1 * jax.random.normal(ks[0], (planes, Cin, 3, 3), jnp.float32),
        "g1": 1.0 + 0.1 * jax.random.normal(ks[1], (planes,), jnp.float32),
        "b1": 0.1 * jax.random.normal(ks[2], (planes,), jnp.float32),
        "w2": 0.1 * jax.random.normal(ks[3], (planes, planes, 3, 3), jnp.float32),
        "g2": 1.0 + 0.1 * jax.random.normal(ks[4], (planes,), jnp.float32),
        "b2": 0.1 * jax.random.normal(ks[5], (planes,), jnp.float32),
        # shortcut conv (1x1, stride) + BN, since stride != 1 / Cin != planes
        "ws": 0.1 * jax.random.normal(ks[6], (planes, Cin, 1, 1), jnp.float32),
        "gs": 1.0 + 0.1 * jax.random.normal(ks[7], (planes,), jnp.float32),
        "bs": jnp.zeros((planes,), jnp.float32),
    }

    x = jax.random.normal(jax.random.PRNGKey(1), (N, Cin, H, W), jnp.float32)

    fwd = jax.jit(basic_block_forward, static_argnums=2)
    out = jax.block_until_ready(fwd(x, params, stride))
    ref = jax.block_until_ready(reference_forward(x, params, stride))

    assert out.shape == (N, planes, H // stride, W // stride), out.shape
    # bf16 MXU inputs + bf16 intermediates (f32 accumulation/epilogue) -> loose tolerance.
    max_diff = jnp.max(jnp.abs(out - ref))
    assert jnp.allclose(out, ref, atol=5e-2, rtol=5e-2), f"max abs diff {max_diff}"

    print("KERNEL_OK")
</pallas_src>

<mosaic_0001>
module attributes {stable_mosaic.version = 11 : i64} {
  func.func @_matmul_stats_kernel(%arg0: i32, %arg1: memref<64x128xbf16, #tpu.memory_space<vmem>>, %arg2: memref<128x128xbf16, #tpu.memory_space<vmem>>, %arg3: memref<64x128xbf16, #tpu.memory_space<vmem>>, %arg4: memref<1x2x128xf32, #tpu.memory_space<vmem>>) attributes {dimension_semantics = [#tpu.dimension_semantics<parallel>], iteration_bounds = array<i64: 2>, scalar_prefetch = 0 : i64, scratch_operands = 0 : i64, tpu.core_type = #tpu.core_type<tc>, window_params = [{transform_indices = @transform_0, window_bounds = array<i64: 64, 128>}, {pipeline_mode = #tpu.pipeline_mode<synchronous>, transform_indices = @transform_1, window_bounds = array<i64: 128, 128>}, {transform_indices = @transform_2, window_bounds = array<i64: 64, 128>}, {transform_indices = @transform_3, window_bounds = array<i64: 1, 2, 128>}]} {
    %c0 = arith.constant 0 : index
    %c0_0 = arith.constant 0 : index
    %0 = vector.load %arg1[%c0, %c0_0] : memref<64x128xbf16, #tpu.memory_space<vmem>>, vector<64x128xbf16>
    %c0_1 = arith.constant 0 : index
    %c0_2 = arith.constant 0 : index
    %1 = vector.load %arg2[%c0_1, %c0_2] : memref<128x128xbf16, #tpu.memory_space<vmem>>, vector<128x128xbf16>
    %cst = arith.constant dense<0.000000e+00> : vector<64x128xf32>
    %2 = tpu.matmul %0, %1, %cst {dimension_numbers = #tpu.dot_dimension_numbers<[1], [0], [0], [1], [0, 0, 1, 1], [], []>} : vector<64x128xbf16>, vector<128x128xbf16>, vector<64x128xf32> -> vector<64x128xf32>
    %3 = arith.truncf %2 : vector<64x128xf32> to vector<64x128xbf16>
    %c0_3 = arith.constant 0 : index
    %c0_4 = arith.constant 0 : index
    %4 = vector.load %arg3[%c0_3, %c0_4] : memref<64x128xbf16, #tpu.memory_space<vmem>>, vector<64x128xbf16>
    tpu.vector_store %arg3[%c0_3, %c0_4], %3 {strides = array<i32>} : memref<64x128xbf16, #tpu.memory_space<vmem>>, vector<64x128xbf16>,
    %cst_5 = arith.constant dense<0.000000e+00> : vector<128xf32>
    %5 = vector.multi_reduction <add>, %2, %cst_5 [0] : vector<64x128xf32> to vector<128xf32>
    %6 = vector.shape_cast %5 : vector<128xf32> to vector<1x128xf32>
    %7 = arith.mulf %2, %2 : vector<64x128xf32>
    %cst_6 = arith.constant dense<0.000000e+00> : vector<128xf32>
    %8 = vector.multi_reduction <add>, %7, %cst_6 [0] : vector<64x128xf32> to vector<128xf32>
    %9 = vector.shape_cast %8 : vector<128xf32> to vector<1x128xf32>
    %10 = tpu.concatenate %6, %9 in 0 : vector<1x128xf32>, vector<1x128xf32> -> vector<2x128xf32>
    %11 = vector.shape_cast %10 : vector<2x128xf32> to vector<1x2x128xf32>
    %c0_7 = arith.constant 0 : index
    %c0_8 = arith.constant 0 : index
    %c0_9 = arith.constant 0 : index
    %12 = vector.load %arg4[%c0_7, %c0_8, %c0_9] : memref<1x2x128xf32, #tpu.memory_space<vmem>>, vector<1x2x128xf32>
    tpu.vector_store %arg4[%c0_7, %c0_8, %c0_9], %11 {strides = array<i32>} : memref<1x2x128xf32, #tpu.memory_space<vmem>>, vector<1x2x128xf32>,
    return
  }
  func.func @transform_0(%arg0: i32) -> (i32, i32) {
    %c0_i32 = arith.constant 0 : i32
    %c0_i32_0 = arith.constant 0 : i32
    return %arg0, %c0_i32 : i32, i32
  }
  func.func @transform_1(%arg0: i32) -> (i32, i32) {
    %c0_i32 = arith.constant 0 : i32
    %c0_i32_0 = arith.constant 0 : i32
    %c0_i32_1 = arith.constant 0 : i32
    return %c0_i32, %c0_i32_0 : i32, i32
  }
  func.func @transform_2(%arg0: i32) -> (i32, i32) {
    %c0_i32 = arith.constant 0 : i32
    %c0_i32_0 = arith.constant 0 : i32
    return %arg0, %c0_i32 : i32, i32
  }
  func.func @transform_3(%arg0: i32) -> (i32, i32, i32) {
    %c0_i32 = arith.constant 0 : i32
    %c0_i32_0 = arith.constant 0 : i32
    %c0_i32_1 = arith.constant 0 : i32
    return %arg0, %c0_i32, %c0_i32_0 : i32, i32, i32
  }
}

module attributes {stable_mosaic.version = 11 : i64} {
  func.func @_bn_apply_kernel(%arg0: i32, %arg1: memref<64x128xbf16, #tpu.memory_space<vmem>>, %arg2: memref<1x128xf32, #tpu.memory_space<vmem>>, %arg3: memref<1x128xf32, #tpu.memory_space<vmem>>, %arg4: memref<64x128xbf16, #tpu.memory_space<vmem>>) attributes {dimension_semantics = [#tpu.dimension_semantics<parallel>], iteration_bounds = array<i64: 2>, scalar_prefetch = 0 : i64, scratch_operands = 0 : i64, tpu.core_type = #tpu.core_type<tc>, window_params = [{transform_indices = @transform_0, window_bounds = array<i64: 64, 128>}, {pipeline_mode = #tpu.pipeline_mode<synchronous>, transform_indices = @transform_1, window_bounds = array<i64: 1, 128>}, {pipeline_mode = #tpu.pipeline_mode<synchronous>, transform_indices = @transform_2, window_bounds = array<i64: 1, 128>}, {transform_indices = @transform_3, window_bounds = array<i64: 64, 128>}]} {
    %c0 = arith.constant 0 : index
    %c0_0 = arith.constant 0 : index
    %0 = vector.load %arg1[%c0, %c0_0] : memref<64x128xbf16, #tpu.memory_space<vmem>>, vector<64x128xbf16>
    %1 = arith.extf %0 : vector<64x128xbf16> to vector<64x128xf32>
    %c0_1 = arith.constant 0 : index
    %c0_2 = arith.constant 0 : index
    %2 = vector.load %arg2[%c0_1, %c0_2] : memref<1x128xf32, #tpu.memory_space<vmem>>, vector<1x128xf32>
    %3 = vector.broadcast %2 : vector<1x128xf32> to vector<64x128xf32>
    %4 = arith.mulf %1, %3 : vector<64x128xf32>
    %c0_3 = arith.constant 0 : index
    %c0_4 = arith.constant 0 : index
    %5 = vector.load %arg3[%c0_3, %c0_4] : memref<1x128xf32, #tpu.memory_space<vmem>>, vector<1x128xf32>
    %6 = vector.broadcast %5 : vector<1x128xf32> to vector<64x128xf32>
    %7 = arith.addf %4, %6 : vector<64x128xf32>
    %cst = arith.constant 0.000000e+00 : f32
    %8 = vector.broadcast %cst : f32 to vector<64x128xf32>
    %9 = arith.maximumf %7, %8 : vector<64x128xf32>
    %10 = arith.truncf %9 : vector<64x128xf32> to vector<64x128xbf16>
    %c0_5 = arith.constant 0 : index
    %c0_6 = arith.constant 0 : index
    %11 = vector.load %arg4[%c0_5, %c0_6] : memref<64x128xbf16, #tpu.memory_space<vmem>>, vector<64x128xbf16>
    tpu.vector_store %arg4[%c0_5, %c0_6], %10 {strides = array<i32>} : memref<64x128xbf16, #tpu.memory_space<vmem>>, vector<64x128xbf16>,
    return
  }
  func.func @transform_0(%arg0: i32) -> (i32, i32) {
    %c0_i32 = arith.constant 0 : i32
    %c0_i32_0 = arith.constant 0 : i32
    return %arg0, %c0_i32 : i32, i32
  }
  func.func @transform_1(%arg0: i32) -> (i32, i32) {
    %c0_i32 = arith.constant 0 : i32
    %c0_i32_0 = arith.constant 0 : i32
    %c0_i32_1 = arith.constant 0 : i32
    return %c0_i32, %c0_i32_0 : i32, i32
  }
  func.func @transform_2(%arg0: i32) -> (i32, i32) {
    %c0_i32 = arith.constant 0 : i32
    %c0_i32_0 = arith.constant 0 : i32
    %c0_i32_1 = arith.constant 0 : i32
    return %c0_i32, %c0_i32_0 : i32, i32
  }
  func.func @transform_3(%arg0: i32) -> (i32, i32) {
    %c0_i32 = arith.constant 0 : i32
    %c0_i32_0 = arith.constant 0 : i32
    return %arg0, %c0_i32 : i32, i32
  }
}

module attributes {stable_mosaic.version = 11 : i64} {
  func.func @_bn_apply_kernel(%arg0: i32, %arg1: memref<64x128xbf16, #tpu.memory_space<vmem>>, %arg2: memref<1x128xf32, #tpu.memory_space<vmem>>, %arg3: memref<1x128xf32, #tpu.memory_space<vmem>>, %arg4: memref<64x128xbf16, #tpu.memory_space<vmem>>, %arg5: memref<1x128xf32, #tpu.memory_space<vmem>>, %arg6: memref<1x128xf32, #tpu.memory_space<vmem>>, %arg7: memref<64x128xf32, #tpu.memory_space<vmem>>) attributes {dimension_semantics = [#tpu.dimension_semantics<parallel>], iteration_bounds = array<i64: 2>, scalar_prefetch = 0 : i64, scratch_operands = 0 : i64, tpu.core_type = #tpu.core_type<tc>, window_params = [{transform_indices = @transform_0, window_bounds = array<i64: 64, 128>}, {pipeline_mode = #tpu.pipeline_mode<synchronous>, transform_indices = @transform_1, window_bounds = array<i64: 1, 128>}, {pipeline_mode = #tpu.pipeline_mode<synchronous>, transform_indices = @transform_2, window_bounds = array<i64: 1, 128>}, {transform_indices = @transform_3, window_bounds = array<i64: 64, 128>}, {pipeline_mode = #tpu.pipeline_mode<synchronous>, transform_indices = @transform_4, window_bounds = array<i64: 1, 128>}, {pipeline_mode = #tpu.pipeline_mode<synchronous>, transform_indices = @transform_5, window_bounds = array<i64: 1, 128>}, {transform_indices = @transform_6, window_bounds = array<i64: 64, 128>}]} {
    %c0 = arith.constant 0 : index
    %c0_0 = arith.constant 0 : index
    %0 = vector.load %arg1[%c0, %c0_0] : memref<64x128xbf16, #tpu.memory_space<vmem>>, vector<64x128xbf16>
    %1 = arith.extf %0 : vector<64x128xbf16> to vector<64x128xf32>
    %c0_1 = arith.constant 0 : index
    %c0_2 = arith.constant 0 : index
    %2 = vector.load %arg2[%c0_1, %c0_2] : memref<1x128xf32, #tpu.memory_space<vmem>>, vector<1x128xf32>
    %3 = vector.broadcast %2 : vector<1x128xf32> to vector<64x128xf32>
    %4 = arith.mulf %1, %3 : vector<64x128xf32>
    %c0_3 = arith.constant 0 : index
    %c0_4 = arith.constant 0 : index
    %5 = vector.load %arg3[%c0_3, %c0_4] : memref<1x128xf32, #tpu.memory_space<vmem>>, vector<1x128xf32>
    %6 = vector.broadcast %5 : vector<1x128xf32> to vector<64x128xf32>
    %7 = arith.addf %4, %6 : vector<64x128xf32>
    %c0_5 = arith.constant 0 : index
    %c0_6 = arith.constant 0 : index
    %8 = vector.load %arg4[%c0_5, %c0_6] : memref<64x128xbf16, #tpu.memory_space<vmem>>, vector<64x128xbf16>
    %9 = arith.extf %8 : vector<64x128xbf16> to vector<64x128xf32>
    %c0_7 = arith.constant 0 : index
    %c0_8 = arith.constant 0 : index
    %10 = vector.load %arg5[%c0_7, %c0_8] : memref<1x128xf32, #tpu.memory_space<vmem>>, vector<1x128xf32>
    %11 = vector.broadcast %10 : vector<1x128xf32> to vector<64x128xf32>
    %12 = arith.mulf %9, %11 : vector<64x128xf32>
    %c0_9 = arith.constant 0 : index
    %c0_10 = arith.constant 0 : index
    %13 = vector.load %arg6[%c0_9, %c0_10] : memref<1x128xf32, #tpu.memory_space<vmem>>, vector<1x128xf32>
    %14 = vector.broadcast %13 : vector<1x128xf32> to vector<64x128xf32>
    %15 = arith.addf %12, %14 : vector<64x128xf32>
    %16 = arith.addf %7, %15 : vector<64x128xf32>
    %cst = arith.constant 0.000000e+00 : f32
    %17 = vector.broadcast %cst : f32 to vector<64x128xf32>
    %18 = arith.maximumf %16, %17 : vector<64x128xf32>
    %c0_11 = arith.constant 0 : index
    %c0_12 = arith.constant 0 : index
    %19 = vector.load %arg7[%c0_11, %c0_12] : memref<64x128xf32, #tpu.memory_space<vmem>>, vector<64x128xf32>
    tpu.vector_store %arg7[%c0_11, %c0_12], %18 {strides = array<i32>} : memref<64x128xf32, #tpu.memory_space<vmem>>, vector<64x128xf32>,
    return
  }
  func.func @transform_0(%arg0: i32) -> (i32, i32) {
    %c0_i32 = arith.constant 0 : i32
    %c0_i32_0 = arith.constant 0 : i32
    return %arg0, %c0_i32 : i32, i32
  }
  func.func @transform_1(%arg0: i32) -> (i32, i32) {
    %c0_i32 = arith.constant 0 : i32
    %c0_i32_0 = arith.constant 0 : i32
    %c0_i32_1 = arith.constant 0 : i32
    return %c0_i32, %c0_i32_0 : i32, i32
  }
  func.func @transform_2(%arg0: i32) -> (i32, i32) {
    %c0_i32 = arith.constant 0 : i32
    %c0_i32_0 = arith.constant 0 : i32
    %c0_i32_1 = arith.constant 0 : i32
    return %c0_i32, %c0_i32_0 : i32, i32
  }
  func.func @transform_3(%arg0: i32) -> (i32, i32) {
    %c0_i32 = arith.constant 0 : i32
    %c0_i32_0 = arith.constant 0 : i32
    return %arg0, %c0_i32 : i32, i32
  }
  func.func @transform_4(%arg0: i32) -> (i32, i32) {
    %c0_i32 = arith.constant 0 : i32
    %c0_i32_0 = arith.constant 0 : i32
    %c0_i32_1 = arith.constant 0 : i32
    return %c0_i32, %c0_i32_0 : i32, i32
  }
  func.func @transform_5(%arg0: i32) -> (i32, i32) {
    %c0_i32 = arith.constant 0 : i32
    %c0_i32_0 = arith.constant 0 : i32
    %c0_i32_1 = arith.constant 0 : i32
    return %c0_i32, %c0_i32_0 : i32, i32
  }
  func.func @transform_6(%arg0: i32) -> (i32, i32) {
    %c0_i32 = arith.constant 0 : i32
    %c0_i32_0 = arith.constant 0 : i32
    return %arg0, %c0_i32 : i32, i32
  }
}

</mosaic_0001>

<llo_original>
// kernel: basic_block_forward.5
$region0: #{basic_block_forward.5}
  #allocation0 [shape = 'u32[]', space=smem, size = 0x4, offset = 0x4, fixed_abs, tag = 'smem constant byte address 0x4 - core index']
  #allocation1 [shape = 'u32[144,128]{1,0:T(1,128)}', space=vmem, size = 0x12000, scoped, tag = 'internal scratch']
  %s0 = inlined_call_operand.vmem [shape: bf16[128,128], index: 0, kind: input, shape index: {}]
  %s1 = inlined_call_operand.vmem [shape: bf16[128,128], index: 1, kind: input, shape index: {}]
  %s2 = inlined_call_operand.vmem [shape: bf16[128,128], index: 2, kind: output, shape index: {0}]
  %s3 = inlined_call_operand.vmem [shape: f32[2,2,128], index: 3, kind: output, shape index: {1}]
  %4 = xla_tuple %s2, %s3
  %s5 = sld [smem:[#allocation0]]
  $region49: #{basic_block_forward.5} parent=0
    _
  %s7 = ssub.s32 1, %s5
  %s8 = scalar_select 0, %s7, %s5
  loop: start=0, step=1, limit=4
  $region2: #{basic_block_forward.5} parent=0 // loop_pre_header
    _
  $region3: #{basic_block_forward.5} parent=0 // loop_header
    %s10 = sphi 0, %s14
    %p11 = scmp.ge.s32.totalorder %s10, 4
    %s20 = sphi 0, %s22
    %s23 = sphi 0, %s20
    %s24 = sphi 0, %s23
    %s40 = sphi 0, %s24
    %s44 = sphi 0, %s44
    %s46 = sphi 0, %s44
    %s47 = sphi 0, %s46
    %s61 = sphi 0, %s47
    %s67 = sphi 0, %s69
    %s70 = sphi 0, %s67
    %s71 = sphi 0, %s70
    %s87 = sphi 0, %s71
    %s93 = sphi 0, %s95
    %s96 = sphi 0, %s93
    %s97 = sphi 0, %s96
    %s113 = sphi 0, %s97
  $region4: #{basic_block_forward.5} parent=0 // loop_header_branch
    %13 = sbr.rel (%p11) target = $region8
  $region5: #{basic_block_forward.5} parent=0 // loop_body
    %s15 = ssub.s32 %s10, 1
    %s16 = ssub.s32 %s10, 2
    %s17 = sadd.s32 %s10, 1
    %s18 = ssub.s32 %s10, %s17
    %p19 = scmp.eq.s32.totalorder %s18, 0
    %s21 = sadd.s32 %s20, 1
    %s22 = scalar_select %p19, %s20, %s21
    %p25 = pneg %p19
    %p26 = scmp.eq.s32.totalorder %s10, 1
    %p27 = por %p25, %p26
    %p28 = scmp.ne.s32.totalorder %s20, %s23
    %p29 = scmp.eq.s32.totalorder %s10, 0
    %p30 = por %p28, %p29
    %p31 = scmp.ne.s32.totalorder %s20, %s23
    %p32 = scmp.eq.s32.totalorder %s15, 1
    %p33 = por %p31, %p32
    %p34 = scmp.ne.s32.totalorder %s23, %s24
    %p35 = scmp.eq.s32.totalorder %s15, 0
    %p36 = por %p34, %p35
    %p37 = scmp.ne.s32.totalorder %s23, %s24
    %p38 = scmp.eq.s32.totalorder %s16, 1
    %p39 = por %p37, %p38
    %p41 = scmp.ne.s32.totalorder %s24, %s40
    %p42 = scmp.eq.s32.totalorder %s16, 0
    %p43 = por %p41, %p42
    %s45 = sadd.s32 %s44, 1
    %p48 = scmp.eq.s32.totalorder %s10, 1
    %p49 = scmp.ne.s32.totalorder %s44, %s46
    %p50 = scmp.eq.s32.totalorder %s10, 0
    %p51 = por %p49, %p50
    %p52 = scmp.ne.s32.totalorder %s44, %s46
    %p53 = scmp.eq.s32.totalorder %s15, 1
    %p54 = por %p52, %p53
    %p55 = scmp.ne.s32.totalorder %s46, %s47
    %p56 = scmp.eq.s32.totalorder %s15, 0
    %p57 = por %p55, %p56
    %p58 = scmp.ne.s32.totalorder %s46, %s47
    %p59 = scmp.eq.s32.totalorder %s16, 1
    %p60 = por %p58, %p59
    %p62 = scmp.ne.s32.totalorder %s47, %s61
    %p63 = scmp.eq.s32.totalorder %s16, 0
    %p64 = por %p62, %p63
    %s65 = ssub.s32 %s10, %s17
    %p66 = scmp.eq.s32.totalorder %s65, 0
    %s68 = sadd.s32 %s67, 1
    %s69 = scalar_select %p66, %s67, %s68
    %p72 = pneg %p66
    %p73 = scmp.eq.s32.totalorder %s10, 1
    %p74 = por %p72, %p73
    %p75 = scmp.ne.s32.totalorder %s67, %s70
    %p76 = scmp.eq.s32.totalorder %s10, 0
    %p77 = por %p75, %p76
    %p78 = scmp.ne.s32.totalorder %s67, %s70
    %p79 = scmp.eq.s32.totalorder %s15, 1
    %p80 = por %p78, %p79
    %p81 = scmp.ne.s32.totalorder %s70, %s71
    %p82 = scmp.eq.s32.totalorder %s15, 0
    %p83 = por %p81, %p82
    %p84 = scmp.ne.s32.totalorder %s70, %s71
    %p85 = scmp.eq.s32.totalorder %s16, 1
    %p86 = por %p84, %p85
    %p88 = scmp.ne.s32.totalorder %s71, %s87
    %p89 = scmp.eq.s32.totalorder %s16, 0
    %p90 = por %p88, %p89
    %s91 = ssub.s32 %s10, %s17
    %p92 = scmp.eq.s32.totalorder %s91, 0
    %s94 = sadd.s32 %s93, 1
    %s95 = scalar_select %p92, %s93, %s94
    %p98 = pneg %p92
    %p99 = scmp.eq.s32.totalorder %s10, 1
    %p100 = por %p98, %p99
    %p101 = scmp.ne.s32.totalorder %s93, %s96
    %p102 = scmp.eq.s32.totalorder %s10, 0
    %p103 = por %p101, %p102
    %p104 = scmp.ne.s32.totalorder %s93, %s96
    %p105 = scmp.eq.s32.totalorder %s15, 1
    %p106 = por %p104, %p105
    %p107 = scmp.ne.s32.totalorder %s96, %s97
    %p108 = scmp.eq.s32.totalorder %s15, 0
    %p109 = por %p107, %p108
    %p110 = scmp.ne.s32.totalorder %s96, %s97
    %p111 = scmp.eq.s32.totalorder %s16, 1
    %p112 = por %p110, %p111
    %p114 = scmp.ne.s32.totalorder %s97, %s113
    %p115 = scmp.eq.s32.totalorder %s16, 0
    %p116 = por %p114, %p115
    %p117 = scmp.le.s32.totalorder 1, %s10
    %p118 = scmp.lt.s32.totalorder %s10, 3
    %p119 = pnand %p117, %p118
    %p120 = pneg %p119
    // Predicated region
    $region9: #{basic_block_forward.5} parent=5 // pred_check
      _
    $region10: #{basic_block_forward.5} parent=5 // pred_check_branch
      %122 = sbr.rel (%p119) target = $region12
    $region11: #{basic_block_forward.5} parent=5 // pred_region
      %s123 = ssub.s32 %s10, 1
      // Predicated region
      $region13: #{basic_block_forward.5} parent=11 // pred_check
        %p124 = pneg %p57
      $region14: #{basic_block_forward.5} parent=11 // pred_check_branch
        %126 = sbr.rel (%p124) target = $region16
      $region15: #{basic_block_forward.5} parent=11 // pred_region
        _
      $region16: #{basic_block_forward.5} parent=11 // pred_fallthru
        _
    $region12: #{basic_block_forward.5} parent=5 // pred_fallthru
      _
    %p127 = scmp.lt.s32.totalorder %s10, 2
    // Predicated region
    $region17: #{basic_block_forward.5} parent=5 // pred_check
      %p128 = pneg %p127
    $region18: #{basic_block_forward.5} parent=5 // pred_check_branch
      %130 = sbr.rel (%p128) target = $region20
    $region19: #{basic_block_forward.5} parent=5 // pred_region
      // Predicated region
      $region21: #{basic_block_forward.5} parent=19 // pred_check
        %p131 = pneg %p30
      $region22: #{basic_block_forward.5} parent=19 // pred_check_branch
        %133 = sbr.rel (%p131) target = $region24
      $region23: #{basic_block_forward.5} parent=19 // pred_region
        %s134 = smul.u32 8, %s10
        %p135 = scmp.lt.s32.totalorder %s134, 15
        %s136 = scalar_select %p135, %s134, 15
        %s137 = smul.addr %s136, 4
        %s138 = scalar_lea.vmem %s0, %s137
        %s139 = smul.u32 8, %s10
      $region24: #{basic_block_forward.5} parent=19 // pred_fallthru
        _
    $region20: #{basic_block_forward.5} parent=5 // pred_fallthru
      _
    %p140 = scmp.le.s32.totalorder 1, %s10
    %p141 = scmp.lt.s32.totalorder %s10, 3
    %p142 = pnand %p140, %p141
    %p143 = pneg %p142
    // Predicated region
    $region25: #{basic_block_forward.5} parent=5 // pred_check
      _
    $region26: #{basic_block_forward.5} parent=5 // pred_check_branch
      %145 = sbr.rel (%p142) target = $region28
    $region27: #{basic_block_forward.5} parent=5 // pred_region
      %s146 = ssub.s32 %s10, 1
      %s147 = smul.u32 8, %s15
      %p148 = scmp.lt.s32.totalorder %s147, 15
      %s149 = scalar_select %p148, %s147, 15
      %s150 = smul.addr %s149, 4
      %s151 = scalar_lea.vmem %s0, %s150
      %p152 = pneg %p36
      %p153 = pneg %p33
      %p154 = pneg %p57
      %p155 = pneg %p54
      %p156 = pneg %p83
      %p157 = pneg %p80
      %s158 = smul.u32 8, %s15
      %p159 = scmp.lt.s32.totalorder %s158, 15
      %s160 = scalar_select %p159, %s158, 15
      %s161 = smul.addr %s160, 4
      %s162 = scalar_lea.vmem %s2, %s161
      %p163 = pneg %p109
      %p164 = pneg %p106
      %p165 = scmp.lt.s32.totalorder %s15, 1
      %s166 = scalar_select %p165, %s15, 1
      %s167 = smul.addr %s166, 2
      %s168 = scalar_lea.vmem %s3, %s167
      %s169 = smul.u32 8, %s15
      %p170 = scmp.lt.s32.totalorder %s169, 15
      %s171 = scalar_select %p170, %s169, 15
      %s172 = smul.addr %s171, 4
      %s173 = scalar_lea.vmem %s0, %s172
      %s174 = smul.u32 8, %s15
      %s175 = smul.u32 8, %s15
      %p176 = scmp.lt.s32.totalorder %s175, 15
      %s177 = scalar_select %p176, %s175, 15
      %s178 = smul.addr %s177, 4
      %s179 = scalar_lea.vmem %s2, %s178
      %s180 = smul.u32 8, %s15
      %p181 = scmp.lt.s32.totalorder %s15, 1
      %s182 = scalar_select %p181, %s15, 1
      %s183 = smul.addr %s182, 2
      %s184 = scalar_lea.vmem %s3, %s183
      %v186 = vld [vmem:[%s173] sm:$0xf]
      %v187 = vld [vmem:[%s173 + $0x4] sm:$0xf]
      %v188 = vld [vmem:[%s173 + $0x8] sm:$0xf]
      %v189 = vld [vmem:[%s173 + $0xc] sm:$0xf]
      %v190 = vld [vmem:[%s173 + $0x10] sm:$0xf]
      %v191 = vld [vmem:[%s173 + $0x14] sm:$0xf]
      %v192 = vld [vmem:[%s173 + $0x18] sm:$0xf]
      %v193 = vld [vmem:[%s173 + $0x1c] sm:$0xf]
      %v194 = vld [vmem:[%s1] sm:$0xf]
      %v195 = vld [vmem:[%s1 + $0x4] sm:$0xf]
      %v196 = vld [vmem:[%s1 + $0x8] sm:$0xf]
      %v197 = vld [vmem:[%s1 + $0xc] sm:$0xf]
      %v198 = vld [vmem:[%s1 + $0x10] sm:$0xf]
      %v199 = vld [vmem:[%s1 + $0x14] sm:$0xf]
      %v200 = vld [vmem:[%s1 + $0x18] sm:$0xf]
      %v201 = vld [vmem:[%s1 + $0x1c] sm:$0xf]
      %v202 = vld [vmem:[%s1 + $0x20] sm:$0xf]
      %v203 = vld [vmem:[%s1 + $0x24] sm:$0xf]
      %v204 = vld [vmem:[%s1 + $0x28] sm:$0xf]
      %v205 = vld [vmem:[%s1 + $0x2c] sm:$0xf]
      %v206 = vld [vmem:[%s1 + $0x30] sm:$0xf]
      %v207 = vld [vmem:[%s1 + $0x34] sm:$0xf]
      %v208 = vld [vmem:[%s1 + $0x38] sm:$0xf]
      %v209 = vld [vmem:[%s1 + $0x3c] sm:$0xf]
      %v218 = vunpack.c.l.b16 %v186
      %v219 = vunpack.c.l.b16 %v187
      %v220 = vunpack.c.l.b16 %v188
      %v221 = vunpack.c.l.b16 %v189
      %v222 = vunpack.c.l.b16 %v190
      %v223 = vunpack.c.l.b16 %v191
      %v224 = vunpack.c.l.b16 %v192
      %v225 = vunpack.c.l.b16 %v193
      %v226 = vpack.c.b16 %v219, %v218
      %v227 = vpack.c.b16 %v221, %v220
      %v228 = vpack.c.b16 %v223, %v222
      %v229 = vpack.c.b16 %v225, %v224
      %v250 = vunpack.c.l.b16 %v194
      %v251 = vunpack.c.l.b16 %v195
      %v252 = vunpack.c.l.b16 %v196
      %v253 = vunpack.c.l.b16 %v197
      %v254 = vunpack.c.l.b16 %v198
      %v255 = vunpack.c.l.b16 %v199
      %v256 = vunpack.c.l.b16 %v200
      %v257 = vunpack.c.l.b16 %v201
      %v258 = vunpack.c.l.b16 %v202
      %v259 = vunpack.c.l.b16 %v203
      %v260 = vunpack.c.l.b16 %v204
      %v261 = vunpack.c.l.b16 %v205
      %v262 = vunpack.c.l.b16 %v206
      %v263 = vunpack.c.l.b16 %v207
      %v264 = vunpack.c.l.b16 %v208
      %v265 = vunpack.c.l.b16 %v209
      %v266 = vpack.c.b16 %v251, %v250
      %v267 = vpack.c.b16 %v253, %v252
      %v268 = vpack.c.b16 %v255, %v254
      %v269 = vpack.c.b16 %v257, %v256
      %v270 = vpack.c.b16 %v259, %v258
      %v271 = vpack.c.b16 %v261, %v260
      %v272 = vpack.c.b16 %v263, %v262
      %v273 = vpack.c.b16 %v265, %v264
      %282 = vmatprep.subr.bf16.mxu0 0
      %283 = vmatpush1.bf16.msra.mxu0 %v266
      %284 = vmatprep.subr.bf16.mxu0 0
      %285 = vmatpush1.bf16.msra.mxu0 %v267
      %286 = vmatprep.subr.bf16.mxu0 0
      %287 = vmatpush1.bf16.msra.mxu0 %v268
      %288 = vmatprep.subr.bf16.mxu0 0
      %289 = vmatpush1.bf16.msra.mxu0 %v269
      %290 = vmatprep.subr.bf16.mxu0 0
      %291 = vmatpush1.bf16.msra.mxu0 %v270
      %292 = vmatprep.subr.bf16.mxu0 0
      %293 = vmatpush1.bf16.msra.mxu0 %v271
      %294 = vmatprep.subr.bf16.mxu0 0
      %295 = vmatpush1.bf16.msra.mxu0 %v272
      %296 = vmatprep.subr.bf16.mxu0 0
      %297 = vmatpush1.bf16.msra.mxu0 %v273
      %298 = vmatprep.subr.bf16.mxu0 0
      %299 = vmatpush1.bf16.msra.mxu0 0
      %300 = vmatprep.subr.bf16.mxu0 0
      %301 = vmatpush1.bf16.msra.mxu0 0
      %302 = vmatprep.subr.bf16.mxu0 0
      %303 = vmatpush1.bf16.msra.mxu0 0
      %304 = vmatprep.subr.bf16.mxu0 0
      %305 = vmatpush1.bf16.msra.mxu0 0
      %306 = vmatprep.subr.bf16.mxu0 0
      %307 = vmatpush1.bf16.msra.mxu0 0
      %308 = vmatprep.subr.bf16.mxu0 0
      %309 = vmatpush1.bf16.msra.mxu0 0
      %310 = vmatprep.subr.bf16.mxu0 0
      %311 = vmatpush1.bf16.msra.mxu0 0
      %312 = vmatprep.subr.bf16.mxu0 0
      %313 = vmatpush1.bf16.msra.mxu0 0
      %314 = vmatprep.mubr.bf16.mxu0 0
      %315 = vmatmul.mubr.bf16.gmra.mrb[0].mxu0 %v226
      %v316 = vpop.f32.mrb[0].mxu0
      %v317 = vadd.f32 0.0, %v316
      %v318 = vpop.f32.mrb[0].mxu0
      %v319 = vpop.f32.mrb[0].mxu0
      %v320 = vadd.f32 0.0, %v319
      %v321 = vpop.f32.mrb[0].mxu0
      %322 = vmatprep.mubr.bf16.mxu0 0
      %323 = vmatmul.mubr.bf16.gmra.mrb[0].mxu0 %v227
      %v324 = vpop.f32.mrb[0].mxu0
      %v325 = vadd.f32 0.0, %v324
      %v326 = vpop.f32.mrb[0].mxu0
      %v327 = vpop.f32.mrb[0].mxu0
      %v328 = vadd.f32 0.0, %v327
      %v329 = vpop.f32.mrb[0].mxu0
      %330 = vmatprep.mubr.bf16.mxu0 0
      %331 = vmatmul.mubr.bf16.gmra.mrb[0].mxu0 %v228
      %v332 = vpop.f32.mrb[0].mxu0
      %v333 = vadd.f32 0.0, %v332
      %v334 = vpop.f32.mrb[0].mxu0
      %v335 = vpop.f32.mrb[0].mxu0
      %v336 = vadd.f32 0.0, %v335
      %v337 = vpop.f32.mrb[0].mxu0
      %338 = vmatprep.mubr.bf16.mxu0 0
      %339 = vmatmul.mubr.bf16.gmra.mrb[0].mxu0 %v229
      %v340 = vpop.f32.mrb[0].mxu0
      %v341 = vadd.f32 0.0, %v340
      %v342 = vpop.f32.mrb[0].mxu0
      %v343 = vpop.f32.mrb[0].mxu0
      %v344 = vadd.f32 0.0, %v343
      %v345 = vpop.f32.mrb[0].mxu0
      %346 = vdwg.mxu0
      %v347 = vpack.c.bf16 %v320, %v317
      %v348 = vpack.c.bf16 %v328, %v325
      %v349 = vpack.c.bf16 %v336, %v333
      %v350 = vpack.c.bf16 %v344, %v341
      %v355 = vunpack.c.l.b16 %v347
      %v356 = vunpack.c.h.b16 %v347
      %v357 = vunpack.c.l.b16 %v348
      %v358 = vunpack.c.h.b16 %v348
      %v359 = vunpack.c.l.b16 %v349
      %v360 = vunpack.c.h.b16 %v349
      %v361 = vunpack.c.l.b16 %v350
      %v362 = vunpack.c.h.b16 %v350
      %v363 = vpack.c.b16 %v355, %v355
      %v364 = vpack.c.b16 %v356, %v356
      %v365 = vpack.c.b16 %v357, %v357
      %v366 = vpack.c.b16 %v358, %v358
      %v367 = vpack.c.b16 %v359, %v359
      %v368 = vpack.c.b16 %v360, %v360
      %v369 = vpack.c.b16 %v361, %v361
      %v370 = vpack.c.b16 %v362, %v362
      %379 = vst [vmem:[%s179] sm:$0xf] %v363
      %380 = vst [vmem:[%s179 + $0x4] sm:$0xf] %v364
      %381 = vst [vmem:[%s179 + $0x8] sm:$0xf] %v365
      %382 = vst [vmem:[%s179 + $0xc] sm:$0xf] %v366
      %383 = vst [vmem:[%s179 + $0x10] sm:$0xf] %v367
      %384 = vst [vmem:[%s179 + $0x14] sm:$0xf] %v368
      %385 = vst [vmem:[%s179 + $0x18] sm:$0xf] %v369
      %386 = vst [vmem:[%s179 + $0x1c] sm:$0xf] %v370
      %v387 = vadd.f32 %v317, %v320
      %v388 = vadd.f32 %v387, %v325
      %v389 = vadd.f32 %v388, %v328
      %v390 = vadd.f32 %v389, %v333
      %v391 = vadd.f32 %v390, %v336
      %v392 = vadd.f32 %v391, %v341
      %v393 = vadd.f32 %v392, %v344
      %v394 = vrot.slane %v393, 4
      %v395 = vadd.f32 %v393, %v394
      %v396 = vrot.slane %v395, 2
      %v397 = vadd.f32 %v395, %v396
      %v398 = vrot.slane %v397, 1
      %v399 = vadd.f32 %v397, %v398
      %v400 = vmul.f32 %v317, %v317
      %v401 = vmul.f32 %v320, %v320
      %v402 = vmul.f32 %v325, %v325
      %v403 = vmul.f32 %v328, %v328
      %v404 = vmul.f32 %v333, %v333
      %v405 = vmul.f32 %v336, %v336
      %v406 = vmul.f32 %v341, %v341
      %v407 = vmul.f32 %v344, %v344
      %v408 = vadd.f32 %v400, %v401
      %v409 = vadd.f32 %v408, %v402
      %v410 = vadd.f32 %v409, %v403
      %v411 = vadd.f32 %v410, %v404
      %v412 = vadd.f32 %v411, %v405
      %v413 = vadd.f32 %v412, %v406
      %v414 = vadd.f32 %v413, %v407
      %v415 = vrot.slane %v414, 4
      %v416 = vadd.f32 %v414, %v415
      %v417 = vrot.slane %v416, 2
      %v418 = vadd.f32 %v416, %v417
      %v419 = vrot.slane %v418, 1
      %v420 = vadd.f32 %v418, %v419
      %vm421 = vcmask 1040384
      %v422 = vsel %vm421, %v399, %v420
      %423 = vst [vmem:[%s184] sm:$0x3] %v422
      %s424 = smul.u32 8, %s15
      %p425 = scmp.lt.s32.totalorder %s424, 15
      %s426 = scalar_select %p425, %s424, 15
      %s427 = smul.addr %s426, 4
      %s428 = scalar_lea.vmem %s2, %s427
      %p429 = scmp.lt.s32.totalorder %s15, 1
      %s430 = scalar_select %p429, %s15, 1
      %s431 = smul.addr %s430, 2
      %s432 = scalar_lea.vmem %s3, %s431
      // Predicated region
      $region29: #{basic_block_forward.5} parent=27 // pred_check
        %p433 = pneg %p80
      $region30: #{basic_block_forward.5} parent=27 // pred_check_branch
        %435 = sbr.rel (%p433) target = $region32
      $region31: #{basic_block_forward.5} parent=27 // pred_region
        %s436 = smul.u32 8, %s15
      $region32: #{basic_block_forward.5} parent=27 // pred_fallthru
        _
      // Predicated region
      $region33: #{basic_block_forward.5} parent=27 // pred_check
        %p437 = pneg %p106
      $region34: #{basic_block_forward.5} parent=27 // pred_check_branch
        %439 = sbr.rel (%p437) target = $region36
      $region35: #{basic_block_forward.5} parent=27 // pred_region
        _
      $region36: #{basic_block_forward.5} parent=27 // pred_fallthru
        _
    $region28: #{basic_block_forward.5} parent=5 // pred_fallthru
      _
    %p440 = scmp.le.s32.totalorder 2, %s10
    // Predicated region
    $region37: #{basic_block_forward.5} parent=5 // pred_check
      %p441 = pneg %p440
    $region38: #{basic_block_forward.5} parent=5 // pred_check_branch
      %443 = sbr.rel (%p441) target = $region40
    $region39: #{basic_block_forward.5} parent=5 // pred_region
      %s444 = ssub.s32 %s10, 2
      // Predicated region
      $region41: #{basic_block_forward.5} parent=39 // pred_check
        %p445 = pneg %p86
      $region42: #{basic_block_forward.5} parent=39 // pred_check_branch
        %447 = sbr.rel (%p445) target = $region44
      $region43: #{basic_block_forward.5} parent=39 // pred_region
        %s448 = smul.u32 8, %s16
        %p449 = scmp.lt.s32.totalorder %s448, 15
        %s450 = scalar_select %p449, %s448, 15
        %s451 = smul.addr %s450, 4
        %s452 = scalar_lea.vmem %s2, %s451
      $region44: #{basic_block_forward.5} parent=39 // pred_fallthru
        _
      // Predicated region
      $region45: #{basic_block_forward.5} parent=39 // pred_check
        %p453 = pneg %p112
      $region46: #{basic_block_forward.5} parent=39 // pred_check_branch
        %455 = sbr.rel (%p453) target = $region48
      $region47: #{basic_block_forward.5} parent=39 // pred_region
        %p456 = scmp.lt.s32.totalorder %s16, 1
        %s457 = scalar_select %p456, %s16, 1
        %s458 = smul.addr %s457, 2
        %s459 = scalar_lea.vmem %s3, %s458
      $region48: #{basic_block_forward.5} parent=39 // pred_fallthru
        _
    $region40: #{basic_block_forward.5} parent=5 // pred_fallthru
      _
  $region6: #{basic_block_forward.5} parent=0 // loop_footer
    %s14 = sadd.s32 1, %s10
  $region7: #{basic_block_forward.5} parent=0 // loop_footer_branch
    %9 = sbr.rel target = $region3
  $region8: #{basic_block_forward.5} parent=0 // loop_exit
    _

// kernel: basic_block_forward.6
$region0: #{basic_block_forward.6}
  #allocation0 [shape = 'u32[]', space=smem, size = 0x4, offset = 0x4, fixed_abs, tag = 'smem constant byte address 0x4 - core index']
  #allocation1 [shape = 'u32[144,128]{1,0:T(1,128)}', space=vmem, size = 0x12000, scoped, tag = 'internal scratch']
  %s0 = inlined_call_operand.vmem [shape: bf16[128,128], index: 0, kind: input, shape index: {}]
  %s1 = inlined_call_operand.vmem [shape: f32[1,128], index: 1, kind: input, shape index: {}]
  %s2 = inlined_call_operand.vmem [shape: f32[1,128], index: 2, kind: input, shape index: {}]
  %s3 = inlined_call_operand.vmem [shape: bf16[128,128], index: 3, kind: output, shape index: {}]
  %s4 = sld [smem:[#allocation0]]
  $region45: #{basic_block_forward.6} parent=0
    _
  %s6 = ssub.s32 1, %s4
  %s7 = scalar_select 0, %s6, %s4
  loop: start=0, step=1, limit=4
  $region2: #{basic_block_forward.6} parent=0 // loop_pre_header
    _
  $region3: #{basic_block_forward.6} parent=0 // loop_header
    %s9 = sphi 0, %s13
    %p10 = scmp.ge.s32.totalorder %s9, 4
    %s19 = sphi 0, %s21
    %s22 = sphi 0, %s19
    %s23 = sphi 0, %s22
    %s39 = sphi 0, %s23
    %s43 = sphi 0, %s43
    %s45 = sphi 0, %s43
    %s46 = sphi 0, %s45
    %s60 = sphi 0, %s46
    %s64 = sphi 0, %s64
    %s66 = sphi 0, %s64
    %s67 = sphi 0, %s66
    %s81 = sphi 0, %s67
    %s87 = sphi 0, %s89
    %s90 = sphi 0, %s87
    %s91 = sphi 0, %s90
    %s107 = sphi 0, %s91
  $region4: #{basic_block_forward.6} parent=0 // loop_header_branch
    %12 = sbr.rel (%p10) target = $region8
  $region5: #{basic_block_forward.6} parent=0 // loop_body
    %s14 = ssub.s32 %s9, 1
    %s15 = ssub.s32 %s9, 2
    %s16 = sadd.s32 %s9, 1
    %s17 = ssub.s32 %s9, %s16
    %p18 = scmp.eq.s32.totalorder %s17, 0
    %s20 = sadd.s32 %s19, 1
    %s21 = scalar_select %p18, %s19, %s20
    %p24 = pneg %p18
    %p25 = scmp.eq.s32.totalorder %s9, 1
    %p26 = por %p24, %p25
    %p27 = scmp.ne.s32.totalorder %s19, %s22
    %p28 = scmp.eq.s32.totalorder %s9, 0
    %p29 = por %p27, %p28
    %p30 = scmp.ne.s32.totalorder %s19, %s22
    %p31 = scmp.eq.s32.totalorder %s14, 1
    %p32 = por %p30, %p31
    %p33 = scmp.ne.s32.totalorder %s22, %s23
    %p34 = scmp.eq.s32.totalorder %s14, 0
    %p35 = por %p33, %p34
    %p36 = scmp.ne.s32.totalorder %s22, %s23
    %p37 = scmp.eq.s32.totalorder %s15, 1
    %p38 = por %p36, %p37
    %p40 = scmp.ne.s32.totalorder %s23, %s39
    %p41 = scmp.eq.s32.totalorder %s15, 0
    %p42 = por %p40, %p41
    %s44 = sadd.s32 %s43, 1
    %p47 = scmp.eq.s32.totalorder %s9, 1
    %p48 = scmp.ne.s32.totalorder %s43, %s45
    %p49 = scmp.eq.s32.totalorder %s9, 0
    %p50 = por %p48, %p49
    %p51 = scmp.ne.s32.totalorder %s43, %s45
    %p52 = scmp.eq.s32.totalorder %s14, 1
    %p53 = por %p51, %p52
    %p54 = scmp.ne.s32.totalorder %s45, %s46
    %p55 = scmp.eq.s32.totalorder %s14, 0
    %p56 = por %p54, %p55
    %p57 = scmp.ne.s32.totalorder %s45, %s46
    %p58 = scmp.eq.s32.totalorder %s15, 1
    %p59 = por %p57, %p58
    %p61 = scmp.ne.s32.totalorder %s46, %s60
    %p62 = scmp.eq.s32.totalorder %s15, 0
    %p63 = por %p61, %p62
    %s65 = sadd.s32 %s64, 1
    %p68 = scmp.eq.s32.totalorder %s9, 1
    %p69 = scmp.ne.s32.totalorder %s64, %s66
    %p70 = scmp.eq.s32.totalorder %s9, 0
    %p71 = por %p69, %p70
    %p72 = scmp.ne.s32.totalorder %s64, %s66
    %p73 = scmp.eq.s32.totalorder %s14, 1
    %p74 = por %p72, %p73
    %p75 = scmp.ne.s32.totalorder %s66, %s67
    %p76 = scmp.eq.s32.totalorder %s14, 0
    %p77 = por %p75, %p76
    %p78 = scmp.ne.s32.totalorder %s66, %s67
    %p79 = scmp.eq.s32.totalorder %s15, 1
    %p80 = por %p78, %p79
    %p82 = scmp.ne.s32.totalorder %s67, %s81
    %p83 = scmp.eq.s32.totalorder %s15, 0
    %p84 = por %p82, %p83
    %s85 = ssub.s32 %s9, %s16
    %p86 = scmp.eq.s32.totalorder %s85, 0
    %s88 = sadd.s32 %s87, 1
    %s89 = scalar_select %p86, %s87, %s88
    %p92 = pneg %p86
    %p93 = scmp.eq.s32.totalorder %s9, 1
    %p94 = por %p92, %p93
    %p95 = scmp.ne.s32.totalorder %s87, %s90
    %p96 = scmp.eq.s32.totalorder %s9, 0
    %p97 = por %p95, %p96
    %p98 = scmp.ne.s32.totalorder %s87, %s90
    %p99 = scmp.eq.s32.totalorder %s14, 1
    %p100 = por %p98, %p99
    %p101 = scmp.ne.s32.totalorder %s90, %s91
    %p102 = scmp.eq.s32.totalorder %s14, 0
    %p103 = por %p101, %p102
    %p104 = scmp.ne.s32.totalorder %s90, %s91
    %p105 = scmp.eq.s32.totalorder %s15, 1
    %p106 = por %p104, %p105
    %p108 = scmp.ne.s32.totalorder %s91, %s107
    %p109 = scmp.eq.s32.totalorder %s15, 0
    %p110 = por %p108, %p109
    %p111 = scmp.le.s32.totalorder 1, %s9
    %p112 = scmp.lt.s32.totalorder %s9, 3
    %p113 = pnand %p111, %p112
    %p114 = pneg %p113
    // Predicated region
    $region9: #{basic_block_forward.6} parent=5 // pred_check
      _
    $region10: #{basic_block_forward.6} parent=5 // pred_check_branch
      %116 = sbr.rel (%p113) target = $region12
    $region11: #{basic_block_forward.6} parent=5 // pred_region
      %s117 = ssub.s32 %s9, 1
      // Predicated region
      $region13: #{basic_block_forward.6} parent=11 // pred_check
        %p118 = pneg %p56
      $region14: #{basic_block_forward.6} parent=11 // pred_check_branch
        %120 = sbr.rel (%p118) target = $region16
      $region15: #{basic_block_forward.6} parent=11 // pred_region
        _
      $region16: #{basic_block_forward.6} parent=11 // pred_fallthru
        _
      // Predicated region
      $region17: #{basic_block_forward.6} parent=11 // pred_check
        %p121 = pneg %p77
      $region18: #{basic_block_forward.6} parent=11 // pred_check_branch
        %123 = sbr.rel (%p121) target = $region20
      $region19: #{basic_block_forward.6} parent=11 // pred_region
        _
      $region20: #{basic_block_forward.6} parent=11 // pred_fallthru
        _
    $region12: #{basic_block_forward.6} parent=5 // pred_fallthru
      _
    %p124 = scmp.lt.s32.totalorder %s9, 2
    // Predicated region
    $region21: #{basic_block_forward.6} parent=5 // pred_check
      %p125 = pneg %p124
    $region22: #{basic_block_forward.6} parent=5 // pred_check_branch
      %127 = sbr.rel (%p125) target = $region24
    $region23: #{basic_block_forward.6} parent=5 // pred_region
      // Predicated region
      $region25: #{basic_block_forward.6} parent=23 // pred_check
        %p128 = pneg %p29
      $region26: #{basic_block_forward.6} parent=23 // pred_check_branch
        %130 = sbr.rel (%p128) target = $region28
      $region27: #{basic_block_forward.6} parent=23 // pred_region
        %s131 = smul.u32 8, %s9
        %p132 = scmp.lt.s32.totalorder %s131, 15
        %s133 = scalar_select %p132, %s131, 15
        %s134 = smul.addr %s133, 4
        %s135 = scalar_lea.vmem %s0, %s134
        %s136 = smul.u32 8, %s9
      $region28: #{basic_block_forward.6} parent=23 // pred_fallthru
        _
    $region24: #{basic_block_forward.6} parent=5 // pred_fallthru
      _
    %p137 = scmp.le.s32.totalorder 1, %s9
    %p138 = scmp.lt.s32.totalorder %s9, 3
    %p139 = pnand %p137, %p138
    %p140 = pneg %p139
    // Predicated region
    $region29: #{basic_block_forward.6} parent=5 // pred_check
      _
    $region30: #{basic_block_forward.6} parent=5 // pred_check_branch
      %142 = sbr.rel (%p139) target = $region32
    $region31: #{basic_block_forward.6} parent=5 // pred_region
      %s143 = ssub.s32 %s9, 1
      %s144 = smul.u32 8, %s14
      %p145 = scmp.lt.s32.totalorder %s144, 15
      %s146 = scalar_select %p145, %s144, 15
      %s147 = smul.addr %s146, 4
      %s148 = scalar_lea.vmem %s0, %s147
      %p149 = pneg %p35
      %p150 = pneg %p32
      %p151 = pneg %p56
      %p152 = pneg %p53
      %p153 = pneg %p77
      %p154 = pneg %p74
      %p155 = pneg %p103
      %p156 = pneg %p100
      %s157 = smul.u32 8, %s14
      %p158 = scmp.lt.s32.totalorder %s157, 15
      %s159 = scalar_select %p158, %s157, 15
      %s160 = smul.addr %s159, 4
      %s161 = scalar_lea.vmem %s3, %s160
      %s162 = smul.u32 8, %s14
      %p163 = scmp.lt.s32.totalorder %s162, 15
      %s164 = scalar_select %p163, %s162, 15
      %s165 = smul.addr %s164, 4
      %s166 = scalar_lea.vmem %s0, %s165
      %s167 = smul.u32 8, %s14
      %s168 = smul.u32 8, %s14
      %p169 = scmp.lt.s32.totalorder %s168, 15
      %s170 = scalar_select %p169, %s168, 15
      %s171 = smul.addr %s170, 4
      %s172 = scalar_lea.vmem %s3, %s171
      %s173 = smul.u32 8, %s14
      %v174 = vld [vmem:[%s166] sm:$0xf]
      %v175 = vld [vmem:[%s166 + $0x4] sm:$0xf]
      %v176 = vld [vmem:[%s166 + $0x8] sm:$0xf]
      %v177 = vld [vmem:[%s166 + $0xc] sm:$0xf]
      %v178 = vld [vmem:[%s166 + $0x10] sm:$0xf]
      %v179 = vld [vmem:[%s166 + $0x14] sm:$0xf]
      %v180 = vld [vmem:[%s166 + $0x18] sm:$0xf]
      %v181 = vld [vmem:[%s166 + $0x1c] sm:$0xf]
      %v182 = vunpack.c.l.bf16 %v174
      %v183 = vunpack.c.l.bf16 %v175
      %v184 = vunpack.c.l.bf16 %v176
      %v185 = vunpack.c.l.bf16 %v177
      %v186 = vunpack.c.l.bf16 %v178
      %v187 = vunpack.c.l.bf16 %v179
      %v188 = vunpack.c.l.bf16 %v180
      %v189 = vunpack.c.l.bf16 %v181
      %v190 = vld [vmem:[%s1] sm:$0x1]
      %v192 = vlaneseq
      %v193 = vshrl.u32 %v192, 7
      %v194 = vsub.s32 0, %v193
      %v195 = vrot.slane %v190, %v194
      %v197 = vmul.f32 %v182, %v195
      %v198 = vmul.f32 %v183, %v195
      %v199 = vmul.f32 %v184, %v195
      %v200 = vmul.f32 %v185, %v195
      %v201 = vmul.f32 %v186, %v195
      %v202 = vmul.f32 %v187, %v195
      %v203 = vmul.f32 %v188, %v195
      %v204 = vmul.f32 %v189, %v195
      %v205 = vld [vmem:[%s2] sm:$0x1]
      %v207 = vlaneseq
      %v208 = vshrl.u32 %v207, 7
      %v209 = vsub.s32 0, %v208
      %v210 = vrot.slane %v205, %v209
      %v212 = vadd.f32 %v197, %v210
      %v213 = vadd.f32 %v198, %v210
      %v214 = vadd.f32 %v199, %v210
      %v215 = vadd.f32 %v200, %v210
      %v216 = vadd.f32 %v201, %v210
      %v217 = vadd.f32 %v202, %v210
      %v218 = vadd.f32 %v203, %v210
      %v219 = vadd.f32 %v204, %v210
      %v220 = vmax.f32 %v212, 0.0
      %v221 = vmax.f32 %v213, 0.0
      %v222 = vmax.f32 %v214, 0.0
      %v223 = vmax.f32 %v215, 0.0
      %v224 = vmax.f32 %v216, 0.0
      %v225 = vmax.f32 %v217, 0.0
      %v226 = vmax.f32 %v218, 0.0
      %v227 = vmax.f32 %v219, 0.0
      %v228 = vpack.c.bf16 %v221, %v220
      %v229 = vpack.c.bf16 %v223, %v222
      %v230 = vpack.c.bf16 %v225, %v224
      %v231 = vpack.c.bf16 %v227, %v226
      %v236 = vunpack.c.l.b16 %v228
      %v237 = vunpack.c.h.b16 %v228
      %v238 = vunpack.c.l.b16 %v229
      %v239 = vunpack.c.h.b16 %v229
      %v240 = vunpack.c.l.b16 %v230
      %v241 = vunpack.c.h.b16 %v230
      %v242 = vunpack.c.l.b16 %v231
      %v243 = vunpack.c.h.b16 %v231
      %v244 = vpack.c.b16 %v236, %v236
      %v245 = vpack.c.b16 %v237, %v237
      %v246 = vpack.c.b16 %v238, %v238
      %v247 = vpack.c.b16 %v239, %v239
      %v248 = vpack.c.b16 %v240, %v240
      %v249 = vpack.c.b16 %v241, %v241
      %v250 = vpack.c.b16 %v242, %v242
      %v251 = vpack.c.b16 %v243, %v243
      %260 = vst [vmem:[%s172] sm:$0xf] %v244
      %261 = vst [vmem:[%s172 + $0x4] sm:$0xf] %v245
      %262 = vst [vmem:[%s172 + $0x8] sm:$0xf] %v246
      %263 = vst [vmem:[%s172 + $0xc] sm:$0xf] %v247
      %264 = vst [vmem:[%s172 + $0x10] sm:$0xf] %v248
      %265 = vst [vmem:[%s172 + $0x14] sm:$0xf] %v249
      %266 = vst [vmem:[%s172 + $0x18] sm:$0xf] %v250
      %267 = vst [vmem:[%s172 + $0x1c] sm:$0xf] %v251
      %s268 = smul.u32 8, %s14
      %p269 = scmp.lt.s32.totalorder %s268, 15
      %s270 = scalar_select %p269, %s268, 15
      %s271 = smul.addr %s270, 4
      %s272 = scalar_lea.vmem %s3, %s271
      // Predicated region
      $region33: #{basic_block_forward.6} parent=31 // pred_check
        %p273 = pneg %p100
      $region34: #{basic_block_forward.6} parent=31 // pred_check_branch
        %275 = sbr.rel (%p273) target = $region36
      $region35: #{basic_block_forward.6} parent=31 // pred_region
        %s276 = smul.u32 8, %s14
      $region36: #{basic_block_forward.6} parent=31 // pred_fallthru
        _
    $region32: #{basic_block_forward.6} parent=5 // pred_fallthru
      _
    %p277 = scmp.le.s32.totalorder 2, %s9
    // Predicated region
    $region37: #{basic_block_forward.6} parent=5 // pred_check
      %p278 = pneg %p277
    $region38: #{basic_block_forward.6} parent=5 // pred_check_branch
      %280 = sbr.rel (%p278) target = $region40
    $region39: #{basic_block_forward.6} parent=5 // pred_region
      %s281 = ssub.s32 %s9, 2
      // Predicated region
      $region41: #{basic_block_forward.6} parent=39 // pred_check
        %p282 = pneg %p106
      $region42: #{basic_block_forward.6} parent=39 // pred_check_branch
        %284 = sbr.rel (%p282) target = $region44
      $region43: #{basic_block_forward.6} parent=39 // pred_region
        %s285 = smul.u32 8, %s15
        %p286 = scmp.lt.s32.totalorder %s285, 15
        %s287 = scalar_select %p286, %s285, 15
        %s288 = smul.addr %s287, 4
        %s289 = scalar_lea.vmem %s3, %s288
      $region44: #{basic_block_forward.6} parent=39 // pred_fallthru
        _
    $region40: #{basic_block_forward.6} parent=5 // pred_fallthru
      _
  $region6: #{basic_block_forward.6} parent=0 // loop_footer
    %s13 = sadd.s32 1, %s9
  $region7: #{basic_block_forward.6} parent=0 // loop_footer_branch
    %8 = sbr.rel target = $region3
  $region8: #{basic_block_forward.6} parent=0 // loop_exit
    _

// kernel: basic_block_forward.9
$region0: #{basic_block_forward.9}
  #allocation0 [shape = 'u32[]', space=smem, size = 0x4, offset = 0x4, fixed_abs, tag = 'smem constant byte address 0x4 - core index']
  #allocation1 [shape = 'u32[144,128]{1,0:T(1,128)}', space=vmem, size = 0x12000, scoped, tag = 'internal scratch']
  %s0 = inlined_call_operand.vmem [shape: bf16[128,128], index: 0, kind: input, shape index: {}]
  %s1 = inlined_call_operand.vmem [shape: f32[1,128], index: 1, kind: input, shape index: {}]
  %s2 = inlined_call_operand.vmem [shape: f32[1,128], index: 2, kind: input, shape index: {}]
  %s3 = inlined_call_operand.vmem [shape: bf16[128,128], index: 3, kind: input, shape index: {}]
  %s4 = inlined_call_operand.vmem [shape: f32[1,128], index: 4, kind: input, shape index: {}]
  %s5 = inlined_call_operand.vmem [shape: f32[1,128], index: 5, kind: input, shape index: {}]
  %s6 = inlined_call_operand.vmem [shape: f32[128,128], index: 6, kind: output, shape index: {}]
  %s7 = sld [smem:[#allocation0]]
  $region57: #{basic_block_forward.9} parent=0
    _
  %s9 = ssub.s32 1, %s7
  %s10 = scalar_select 0, %s9, %s7
  loop: start=0, step=1, limit=4
  $region2: #{basic_block_forward.9} parent=0 // loop_pre_header
    _
  $region3: #{basic_block_forward.9} parent=0 // loop_header
    %s12 = sphi 0, %s16
    %p13 = scmp.ge.s32.totalorder %s12, 4
    %s22 = sphi 0, %s24
    %s25 = sphi 0, %s22
    %s26 = sphi 0, %s25
    %s42 = sphi 0, %s26
    %s46 = sphi 0, %s46
    %s48 = sphi 0, %s46
    %s49 = sphi 0, %s48
    %s63 = sphi 0, %s49
    %s67 = sphi 0, %s67
    %s69 = sphi 0, %s67
    %s70 = sphi 0, %s69
    %s84 = sphi 0, %s70
    %s90 = sphi 0, %s92
    %s93 = sphi 0, %s90
    %s94 = sphi 0, %s93
    %s110 = sphi 0, %s94
    %s114 = sphi 0, %s114
    %s116 = sphi 0, %s114
    %s117 = sphi 0, %s116
    %s131 = sphi 0, %s117
    %s135 = sphi 0, %s135
    %s137 = sphi 0, %s135
    %s138 = sphi 0, %s137
    %s152 = sphi 0, %s138
    %s158 = sphi 0, %s160
    %s161 = sphi 0, %s158
    %s162 = sphi 0, %s161
    %s178 = sphi 0, %s162
  $region4: #{basic_block_forward.9} parent=0 // loop_header_branch
    %15 = sbr.rel (%p13) target = $region8
  $region5: #{basic_block_forward.9} parent=0 // loop_body
    %s17 = ssub.s32 %s12, 1
    %s18 = ssub.s32 %s12, 2
    %s19 = sadd.s32 %s12, 1
    %s20 = ssub.s32 %s12, %s19
    %p21 = scmp.eq.s32.totalorder %s20, 0
    %s23 = sadd.s32 %s22, 1
    %s24 = scalar_select %p21, %s22, %s23
    %p27 = pneg %p21
    %p28 = scmp.eq.s32.totalorder %s12, 1
    %p29 = por %p27, %p28
    %p30 = scmp.ne.s32.totalorder %s22, %s25
    %p31 = scmp.eq.s32.totalorder %s12, 0
    %p32 = por %p30, %p31
    %p33 = scmp.ne.s32.totalorder %s22, %s25
    %p34 = scmp.eq.s32.totalorder %s17, 1
    %p35 = por %p33, %p34
    %p36 = scmp.ne.s32.totalorder %s25, %s26
    %p37 = scmp.eq.s32.totalorder %s17, 0
    %p38 = por %p36, %p37
    %p39 = scmp.ne.s32.totalorder %s25, %s26
    %p40 = scmp.eq.s32.totalorder %s18, 1
    %p41 = por %p39, %p40
    %p43 = scmp.ne.s32.totalorder %s26, %s42
    %p44 = scmp.eq.s32.totalorder %s18, 0
    %p45 = por %p43, %p44
    %s47 = sadd.s32 %s46, 1
    %p50 = scmp.eq.s32.totalorder %s12, 1
    %p51 = scmp.ne.s32.totalorder %s46, %s48
    %p52 = scmp.eq.s32.totalorder %s12, 0
    %p53 = por %p51, %p52
    %p54 = scmp.ne.s32.totalorder %s46, %s48
    %p55 = scmp.eq.s32.totalorder %s17, 1
    %p56 = por %p54, %p55
    %p57 = scmp.ne.s32.totalorder %s48, %s49
    %p58 = scmp.eq.s32.totalorder %s17, 0
    %p59 = por %p57, %p58
    %p60 = scmp.ne.s32.totalorder %s48, %s49
    %p61 = scmp.eq.s32.totalorder %s18, 1
    %p62 = por %p60, %p61
    %p64 = scmp.ne.s32.totalorder %s49, %s63
    %p65 = scmp.eq.s32.totalorder %s18, 0
    %p66 = por %p64, %p65
    %s68 = sadd.s32 %s67, 1
    %p71 = scmp.eq.s32.totalorder %s12, 1
    %p72 = scmp.ne.s32.totalorder %s67, %s69
    %p73 = scmp.eq.s32.totalorder %s12, 0
    %p74 = por %p72, %p73
    %p75 = scmp.ne.s32.totalorder %s67, %s69
    %p76 = scmp.eq.s32.totalorder %s17, 1
    %p77 = por %p75, %p76
    %p78 = scmp.ne.s32.totalorder %s69, %s70
    %p79 = scmp.eq.s32.totalorder %s17, 0
    %p80 = por %p78, %p79
    %p81 = scmp.ne.s32.totalorder %s69, %s70
    %p82 = scmp.eq.s32.totalorder %s18, 1
    %p83 = por %p81, %p82
    %p85 = scmp.ne.s32.totalorder %s70, %s84
    %p86 = scmp.eq.s32.totalorder %s18, 0
    %p87 = por %p85, %p86
    %s88 = ssub.s32 %s12, %s19
    %p89 = scmp.eq.s32.totalorder %s88, 0
    %s91 = sadd.s32 %s90, 1
    %s92 = scalar_select %p89, %s90, %s91
    %p95 = pneg %p89
    %p96 = scmp.eq.s32.totalorder %s12, 1
    %p97 = por %p95, %p96
    %p98 = scmp.ne.s32.totalorder %s90, %s93
    %p99 = scmp.eq.s32.totalorder %s12, 0
    %p100 = por %p98, %p99
    %p101 = scmp.ne.s32.totalorder %s90, %s93
    %p102 = scmp.eq.s32.totalorder %s17, 1
    %p103 = por %p101, %p102
    %p104 = scmp.ne.s32.totalorder %s93, %s94
    %p105 = scmp.eq.s32.totalorder %s17, 0
    %p106 = por %p104, %p105
    %p107 = scmp.ne.s32.totalorder %s93, %s94
    %p108 = scmp.eq.s32.totalorder %s18, 1
    %p109 = por %p107, %p108
    %p111 = scmp.ne.s32.totalorder %s94, %s110
    %p112 = scmp.eq.s32.totalorder %s18, 0
    %p113 = por %p111, %p112
    %s115 = sadd.s32 %s114, 1
    %p118 = scmp.eq.s32.totalorder %s12, 1
    %p119 = scmp.ne.s32.totalorder %s114, %s116
    %p120 = scmp.eq.s32.totalorder %s12, 0
    %p121 = por %p119, %p120
    %p122 = scmp.ne.s32.totalorder %s114, %s116
    %p123 = scmp.eq.s32.totalorder %s17, 1
    %p124 = por %p122, %p123
    %p125 = scmp.ne.s32.totalorder %s116, %s117
    %p126 = scmp.eq.s32.totalorder %s17, 0
    %p127 = por %p125, %p126
    %p128 = scmp.ne.s32.totalorder %s116, %s117
    %p129 = scmp.eq.s32.totalorder %s18, 1
    %p130 = por %p128, %p129
    %p132 = scmp.ne.s32.totalorder %s117, %s131
    %p133 = scmp.eq.s32.totalorder %s18, 0
    %p134 = por %p132, %p133
    %s136 = sadd.s32 %s135, 1
    %p139 = scmp.eq.s32.totalorder %s12, 1
    %p140 = scmp.ne.s32.totalorder %s135, %s137
    %p141 = scmp.eq.s32.totalorder %s12, 0
    %p142 = por %p140, %p141
    %p143 = scmp.ne.s32.totalorder %s135, %s137
    %p144 = scmp.eq.s32.totalorder %s17, 1
    %p145 = por %p143, %p144
    %p146 = scmp.ne.s32.totalorder %s137, %s138
    %p147 = scmp.eq.s32.totalorder %s17, 0
    %p148 = por %p146, %p147
    %p149 = scmp.ne.s32.totalorder %s137, %s138
    %p150 = scmp.eq.s32.totalorder %s18, 1
    %p151 = por %p149, %p150
    %p153 = scmp.ne.s32.totalorder %s138, %s152
    %p154 = scmp.eq.s32.totalorder %s18, 0
    %p155 = por %p153, %p154
    %s156 = ssub.s32 %s12, %s19
    %p157 = scmp.eq.s32.totalorder %s156, 0
    %s159 = sadd.s32 %s158, 1
    %s160 = scalar_select %p157, %s158, %s159
    %p163 = pneg %p157
    %p164 = scmp.eq.s32.totalorder %s12, 1
    %p165 = por %p163, %p164
    %p166 = scmp.ne.s32.totalorder %s158, %s161
    %p167 = scmp.eq.s32.totalorder %s12, 0
    %p168 = por %p166, %p167
    %p169 = scmp.ne.s32.totalorder %s158, %s161
    %p170 = scmp.eq.s32.totalorder %s17, 1
    %p171 = por %p169, %p170
    %p172 = scmp.ne.s32.totalorder %s161, %s162
    %p173 = scmp.eq.s32.totalorder %s17, 0
    %p174 = por %p172, %p173
    %p175 = scmp.ne.s32.totalorder %s161, %s162
    %p176 = scmp.eq.s32.totalorder %s18, 1
    %p177 = por %p175, %p176
    %p179 = scmp.ne.s32.totalorder %s162, %s178
    %p180 = scmp.eq.s32.totalorder %s18, 0
    %p181 = por %p179, %p180
    %p182 = scmp.le.s32.totalorder 1, %s12
    %p183 = scmp.lt.s32.totalorder %s12, 3
    %p184 = pnand %p182, %p183
    %p185 = pneg %p184
    // Predicated region
    $region9: #{basic_block_forward.9} parent=5 // pred_check
      _
    $region10: #{basic_block_forward.9} parent=5 // pred_check_branch
      %187 = sbr.rel (%p184) target = $region12
    $region11: #{basic_block_forward.9} parent=5 // pred_region
      %s188 = ssub.s32 %s12, 1
      // Predicated region
      $region13: #{basic_block_forward.9} parent=11 // pred_check
        %p189 = pneg %p59
      $region14: #{basic_block_forward.9} parent=11 // pred_check_branch
        %191 = sbr.rel (%p189) target = $region16
      $region15: #{basic_block_forward.9} parent=11 // pred_region
        _
      $region16: #{basic_block_forward.9} parent=11 // pred_fallthru
        _
      // Predicated region
      $region17: #{basic_block_forward.9} parent=11 // pred_check
        %p192 = pneg %p80
      $region18: #{basic_block_forward.9} parent=11 // pred_check_branch
        %194 = sbr.rel (%p192) target = $region20
      $region19: #{basic_block_forward.9} parent=11 // pred_region
        _
      $region20: #{basic_block_forward.9} parent=11 // pred_fallthru
        _
      // Predicated region
      $region21: #{basic_block_forward.9} parent=11 // pred_check
        %p195 = pneg %p127
      $region22: #{basic_block_forward.9} parent=11 // pred_check_branch
        %197 = sbr.rel (%p195) target = $region24
      $region23: #{basic_block_forward.9} parent=11 // pred_region
        _
      $region24: #{basic_block_forward.9} parent=11 // pred_fallthru
        _
      // Predicated region
      $region25: #{basic_block_forward.9} parent=11 // pred_check
        %p198 = pneg %p148
      $region26: #{basic_block_forward.9} parent=11 // pred_check_branch
        %200 = sbr.rel (%p198) target = $region28
      $region27: #{basic_block_forward.9} parent=11 // pred_region
        _
      $region28: #{basic_block_forward.9} parent=11 // pred_fallthru
        _
    $region12: #{basic_block_forward.9} parent=5 // pred_fallthru
      _
    %p201 = scmp.lt.s32.totalorder %s12, 2
    // Predicated region
    $region29: #{basic_block_forward.9} parent=5 // pred_check
      %p202 = pneg %p201
    $region30: #{basic_block_forward.9} parent=5 // pred_check_branch
      %204 = sbr.rel (%p202) target = $region32
    $region31: #{basic_block_forward.9} parent=5 // pred_region
      // Predicated region
      $region33: #{basic_block_forward.9} parent=31 // pred_check
        %p205 = pneg %p32
      $region34: #{basic_block_forward.9} parent=31 // pred_check_branch
        %207 = sbr.rel (%p205) target = $region36
      $region35: #{basic_block_forward.9} parent=31 // pred_region
        %s208 = smul.u32 8, %s12
        %p209 = scmp.lt.s32.totalorder %s208, 15
        %s210 = scalar_select %p209, %s208, 15
        %s211 = smul.addr %s210, 4
        %s212 = scalar_lea.vmem %s0, %s211
        %s213 = smul.u32 8, %s12
      $region36: #{basic_block_forward.9} parent=31 // pred_fallthru
        _
      // Predicated region
      $region37: #{basic_block_forward.9} parent=31 // pred_check
        %p214 = pneg %p100
      $region38: #{basic_block_forward.9} parent=31 // pred_check_branch
        %216 = sbr.rel (%p214) target = $region40
      $region39: #{basic_block_forward.9} parent=31 // pred_region
        %s217 = smul.u32 8, %s12
        %p218 = scmp.lt.s32.totalorder %s217, 15
        %s219 = scalar_select %p218, %s217, 15
        %s220 = smul.addr %s219, 4
        %s221 = scalar_lea.vmem %s3, %s220
        %s222 = smul.u32 8, %s12
      $region40: #{basic_block_forward.9} parent=31 // pred_fallthru
        _
    $region32: #{basic_block_forward.9} parent=5 // pred_fallthru
      _
    %p223 = scmp.le.s32.totalorder 1, %s12
    %p224 = scmp.lt.s32.totalorder %s12, 3
    %p225 = pnand %p223, %p224
    %p226 = pneg %p225
    // Predicated region
    $region41: #{basic_block_forward.9} parent=5 // pred_check
      _
    $region42: #{basic_block_forward.9} parent=5 // pred_check_branch
      %228 = sbr.rel (%p225) target = $region44
    $region43: #{basic_block_forward.9} parent=5 // pred_region
      %s229 = ssub.s32 %s12, 1
      %s230 = smul.u32 8, %s17
      %p231 = scmp.lt.s32.totalorder %s230, 15
      %s232 = scalar_select %p231, %s230, 15
      %s233 = smul.addr %s232, 4
      %s234 = scalar_lea.vmem %s0, %s233
      %p235 = pneg %p38
      %p236 = pneg %p35
      %p237 = pneg %p59
      %p238 = pneg %p56
      %p239 = pneg %p80
      %p240 = pneg %p77
      %s241 = smul.u32 8, %s17
      %p242 = scmp.lt.s32.totalorder %s241, 15
      %s243 = scalar_select %p242, %s241, 15
      %s244 = smul.addr %s243, 4
      %s245 = scalar_lea.vmem %s3, %s244
      %p246 = pneg %p106
      %p247 = pneg %p103
      %p248 = pneg %p127
      %p249 = pneg %p124
      %p250 = pneg %p148
      %p251 = pneg %p145
      %p252 = pneg %p174
      %p253 = pneg %p171
      %s254 = smul.u32 8, %s17
      %p255 = scmp.lt.s32.totalorder %s254, 15
      %s256 = scalar_select %p255, %s254, 15
      %s257 = smul.addr %s256, 8
      %s258 = scalar_lea.vmem %s6, %s257
      %s259 = smul.u32 8, %s17
      %p260 = scmp.lt.s32.totalorder %s259, 15
      %s261 = scalar_select %p260, %s259, 15
      %s262 = smul.addr %s261, 4
      %s263 = scalar_lea.vmem %s0, %s262
      %s264 = smul.u32 8, %s17
      %s265 = smul.u32 8, %s17
      %p266 = scmp.lt.s32.totalorder %s265, 15
      %s267 = scalar_select %p266, %s265, 15
      %s268 = smul.addr %s267, 4
      %s269 = scalar_lea.vmem %s3, %s268
      %s270 = smul.u32 8, %s17
      %s271 = smul.u32 8, %s17
      %p272 = scmp.lt.s32.totalorder %s271, 15
      %s273 = scalar_select %p272, %s271, 15
      %s274 = smul.addr %s273, 8
      %s275 = scalar_lea.vmem %s6, %s274
      %s276 = smul.u32 8, %s17
      %v277 = vld [vmem:[%s263] sm:$0xf]
      %v278 = vld [vmem:[%s263 + $0x4] sm:$0xf]
      %v279 = vld [vmem:[%s263 + $0x8] sm:$0xf]
      %v280 = vld [vmem:[%s263 + $0xc] sm:$0xf]
      %v281 = vld [vmem:[%s263 + $0x10] sm:$0xf]
      %v282 = vld [vmem:[%s263 + $0x14] sm:$0xf]
      %v283 = vld [vmem:[%s263 + $0x18] sm:$0xf]
      %v284 = vld [vmem:[%s263 + $0x1c] sm:$0xf]
      %v285 = vunpack.c.l.bf16 %v277
      %v286 = vunpack.c.l.bf16 %v278
      %v287 = vunpack.c.l.bf16 %v279
      %v288 = vunpack.c.l.bf16 %v280
      %v289 = vunpack.c.l.bf16 %v281
      %v290 = vunpack.c.l.bf16 %v282
      %v291 = vunpack.c.l.bf16 %v283
      %v292 = vunpack.c.l.bf16 %v284
      %v293 = vld [vmem:[%s1] sm:$0x1]
      %v295 = vlaneseq
      %v296 = vshrl.u32 %v295, 7
      %v297 = vsub.s32 0, %v296
      %v298 = vrot.slane %v293, %v297
      %v300 = vmul.f32 %v285, %v298
      %v301 = vmul.f32 %v286, %v298
      %v302 = vmul.f32 %v287, %v298
      %v303 = vmul.f32 %v288, %v298
      %v304 = vmul.f32 %v289, %v298
      %v305 = vmul.f32 %v290, %v298
      %v306 = vmul.f32 %v291, %v298
      %v307 = vmul.f32 %v292, %v298
      %v308 = vld [vmem:[%s2] sm:$0x1]
      %v310 = vlaneseq
      %v311 = vshrl.u32 %v310, 7
      %v312 = vsub.s32 0, %v311
      %v313 = vrot.slane %v308, %v312
      %v315 = vadd.f32 %v300, %v313
      %v316 = vadd.f32 %v301, %v313
      %v317 = vadd.f32 %v302, %v313
      %v318 = vadd.f32 %v303, %v313
      %v319 = vadd.f32 %v304, %v313
      %v320 = vadd.f32 %v305, %v313
      %v321 = vadd.f32 %v306, %v313
      %v322 = vadd.f32 %v307, %v313
      %v323 = vld [vmem:[%s269] sm:$0xf]
      %v324 = vld [vmem:[%s269 + $0x4] sm:$0xf]
      %v325 = vld [vmem:[%s269 + $0x8] sm:$0xf]
      %v326 = vld [vmem:[%s269 + $0xc] sm:$0xf]
      %v327 = vld [vmem:[%s269 + $0x10] sm:$0xf]
      %v328 = vld [vmem:[%s269 + $0x14] sm:$0xf]
      %v329 = vld [vmem:[%s269 + $0x18] sm:$0xf]
      %v330 = vld [vmem:[%s269 + $0x1c] sm:$0xf]
      %v331 = vunpack.c.l.bf16 %v323
      %v332 = vunpack.c.l.bf16 %v324
      %v333 = vunpack.c.l.bf16 %v325
      %v334 = vunpack.c.l.bf16 %v326
      %v335 = vunpack.c.l.bf16 %v327
      %v336 = vunpack.c.l.bf16 %v328
      %v337 = vunpack.c.l.bf16 %v329
      %v338 = vunpack.c.l.bf16 %v330
      %v339 = vld [vmem:[%s4] sm:$0x1]
      %v341 = vlaneseq
      %v342 = vshrl.u32 %v341, 7
      %v343 = vsub.s32 0, %v342
      %v344 = vrot.slane %v339, %v343
      %v346 = vmul.f32 %v331, %v344
      %v347 = vmul.f32 %v332, %v344
      %v348 = vmul.f32 %v333, %v344
      %v349 = vmul.f32 %v334, %v344
      %v350 = vmul.f32 %v335, %v344
      %v351 = vmul.f32 %v336, %v344
      %v352 = vmul.f32 %v337, %v344
      %v353 = vmul.f32 %v338, %v344
      %v354 = vld [vmem:[%s5] sm:$0x1]
      %v356 = vlaneseq
      %v357 = vshrl.u32 %v356, 7
      %v358 = vsub.s32 0, %v357
      %v359 = vrot.slane %v354, %v358
      %v361 = vadd.f32 %v346, %v359
      %v362 = vadd.f32 %v347, %v359
      %v363 = vadd.f32 %v348, %v359
      %v364 = vadd.f32 %v349, %v359
      %v365 = vadd.f32 %v350, %v359
      %v366 = vadd.f32 %v351, %v359
      %v367 = vadd.f32 %v352, %v359
      %v368 = vadd.f32 %v353, %v359
      %v369 = vadd.f32 %v315, %v361
      %v370 = vadd.f32 %v316, %v362
      %v371 = vadd.f32 %v317, %v363
      %v372 = vadd.f32 %v318, %v364
      %v373 = vadd.f32 %v319, %v365
      %v374 = vadd.f32 %v320, %v366
      %v375 = vadd.f32 %v321, %v367
      %v376 = vadd.f32 %v322, %v368
      %v377 = vmax.f32 %v369, 0.0
      %v378 = vmax.f32 %v370, 0.0
      %v379 = vmax.f32 %v371, 0.0
      %v380 = vmax.f32 %v372, 0.0
      %v381 = vmax.f32 %v373, 0.0
      %v382 = vmax.f32 %v374, 0.0
      %v383 = vmax.f32 %v375, 0.0
      %v384 = vmax.f32 %v376, 0.0
      %385 = vst [vmem:[%s275] sm:$0xff] %v377
      %386 = vst [vmem:[%s275 + $0x8] sm:$0xff] %v378
      %387 = vst [vmem:[%s275 + $0x10] sm:$0xff] %v379
      %388 = vst [vmem:[%s275 + $0x18] sm:$0xff] %v380
      %389 = vst [vmem:[%s275 + $0x20] sm:$0xff] %v381
      %390 = vst [vmem:[%s275 + $0x28] sm:$0xff] %v382
      %391 = vst [vmem:[%s275 + $0x30] sm:$0xff] %v383
      %392 = vst [vmem:[%s275 + $0x38] sm:$0xff] %v384
      %s393 = smul.u32 8, %s17
      %p394 = scmp.lt.s32.totalorder %s393, 15
      %s395 = scalar_select %p394, %s393, 15
      %s396 = smul.addr %s395, 8
      %s397 = scalar_lea.vmem %s6, %s396
      // Predicated region
      $region45: #{basic_block_forward.9} parent=43 // pred_check
        %p398 = pneg %p171
      $region46: #{basic_block_forward.9} parent=43 // pred_check_branch
        %400 = sbr.rel (%p398) target = $region48
      $region47: #{basic_block_forward.9} parent=43 // pred_region
        %s401 = smul.u32 8, %s17
      $region48: #{basic_block_forward.9} parent=43 // pred_fallthru
        _
    $region44: #{basic_block_forward.9} parent=5 // pred_fallthru
      _
    %p402 = scmp.le.s32.totalorder 2, %s12
    // Predicated region
    $region49: #{basic_block_forward.9} parent=5 // pred_check
      %p403 = pneg %p402
    $region50: #{basic_block_forward.9} parent=5 // pred_check_branch
      %405 = sbr.rel (%p403) target = $region52
    $region51: #{basic_block_forward.9} parent=5 // pred_region
      %s406 = ssub.s32 %s12, 2
      // Predicated region
      $region53: #{basic_block_forward.9} parent=51 // pred_check
        %p407 = pneg %p177
      $region54: #{basic_block_forward.9} parent=51 // pred_check_branch
        %409 = sbr.rel (%p407) target = $region56
      $region55: #{basic_block_forward.9} parent=51 // pred_region
        %s410 = smul.u32 8, %s18
        %p411 = scmp.lt.s32.totalorder %s410, 15
        %s412 = scalar_select %p411, %s410, 15
        %s413 = smul.addr %s412, 8
        %s414 = scalar_lea.vmem %s6, %s413
      $region56: #{basic_block_forward.9} parent=51 // pred_fallthru
        _
    $region52: #{basic_block_forward.9} parent=5 // pred_fallthru
      _
  $region6: #{basic_block_forward.9} parent=0 // loop_footer
    %s16 = sadd.s32 1, %s12
  $region7: #{basic_block_forward.9} parent=0 // loop_footer_branch
    %11 = sbr.rel target = $region3
  $region8: #{basic_block_forward.9} parent=0 // loop_exit
    _

</llo_original>
